<compile_context>
chip_gen: v5e
topology: v5e:2x2
jax: 0.10.0
libtpu: 0.0.40
codegen_flags: <defaults>
</compile_context>

<pallas_src>
import jax
import jax.numpy as jnp
from jax.experimental import pallas as pl
from jax.experimental.pallas import tpu as pltpu


def wn_matmul_kernel(x_ref, vt_ref, scale_ref, b_ref, o_ref, acc_ref):
    """One (tm, tn) output tile; k-axis accumulates partial products in f32 scratch."""
    k = pl.program_id(2)

    @pl.when(k == 0)
    def _init():
        acc_ref[...] = jnp.zeros_like(acc_ref)

    # MXU matmul: (tm, tk) @ (tk, tn) -> f32 accumulate. RHS already lane-dense.
    acc_ref[...] += jnp.dot(
        x_ref[...], vt_ref[...], preferred_element_type=jnp.float32
    )

    @pl.when(k == pl.num_programs(2) - 1)
    def _finalize():
        # Weight-norm scale (g / ||v||_F) and bias applied once, in f32, then cast.
        o_ref[...] = (acc_ref[...] * scale_ref[...] + b_ref[...]).astype(o_ref.dtype)


def _pick_tile(dim, preferred, alignment):
    """Largest candidate <= preferred that evenly divides `dim`; else the full dim.

    Last-two-dim blocks must be multiples of (8, 128) or equal the full array dim,
    so falling back to the full dimension is always legal."""
    for cand in (preferred, 512, 256, 128, alignment):
        if cand <= preferred and cand <= dim and dim % cand == 0:
            return cand
    return dim


def weight_norm_linear(x, v, g, b, *, tm=256, tn=256, tk=512):
    """y = x @ (v * (g / ||v||_F)).T + b, computed as (x @ v.T) * (g/||v||_F).T + b."""
    B, Din = x.shape
    Dout = v.shape[0]

    # Hoisted global reduction + per-row scale (cannot be fused into an (i,j,k) tiling).
    norm_v = jnp.sqrt(jnp.sum(v.astype(jnp.float32) ** 2))
    scale = (g.astype(jnp.float32) / norm_v).reshape(1, Dout)      # (1, D_out)
    b2d = b.astype(jnp.float32).reshape(1, Dout)                   # (1, D_out)
    vt = v.T                                                       # (D_in, D_out), one-time

    tm = _pick_tile(B, tm, 8)
    tn = _pick_tile(Dout, tn, 128)
    tk = _pick_tile(Din, tk, 128)
    grid = (B // tm, Dout // tn, Din // tk)

    return pl.pallas_call(
        wn_matmul_kernel,
        out_shape=jax.ShapeDtypeStruct((B, Dout), x.dtype),
        grid_spec=pltpu.PrefetchScalarGridSpec(
            num_scalar_prefetch=0,
            grid=grid,
            in_specs=[
                pl.BlockSpec((tm, tk), lambda i, j, k: (i, k)),   # x tile
                pl.BlockSpec((tk, tn), lambda i, j, k: (k, j)),   # v.T tile (lane-dense)
                pl.BlockSpec((1, tn), lambda i, j, k: (0, j)),    # scale tile (k-invariant)
                pl.BlockSpec((1, tn), lambda i, j, k: (0, j)),    # bias tile  (k-invariant)
            ],
            out_specs=pl.BlockSpec((tm, tn), lambda i, j, k: (i, j)),
            scratch_shapes=[pltpu.VMEM((tm, tn), jnp.float32)],
        ),
        compiler_params=pltpu.CompilerParams(
            dimension_semantics=("parallel", "parallel", "arbitrary"),
        ),
    )(x, vt, scale, b2d)


def reference_forward(x, v, g, b):
    # Pure-JAX reference mirroring the PyTorch semantics exactly.
    norm_v = jnp.linalg.norm(v)                 # Frobenius norm (scalar)
    w = v * (g / norm_v)                        # (D_out, D_in)
    return x @ w.T + b


if __name__ == "__main__":
    # Small but grid-exercising shapes: k-axis has 2 steps with tk=128.
    B, Din, Dout = 8, 256, 128

    key = jax.random.PRNGKey(0)
    kw, kb, kx = jax.random.split(key, 3)

    # Deterministic parameter init (stands in for nn.Linear's weight/bias).
    w0 = jax.random.normal(kw, (Dout, Din), dtype=jnp.float32) * 0.1
    bias = jax.random.normal(kb, (Dout,), dtype=jnp.float32) * 0.1

    # WeightNorm._reset(): split w0 into (g, v).  (Host-side setup, plain JAX.)
    g = jnp.linalg.norm(w0, axis=-1, keepdims=True)        # (D_out, 1)
    v = w0 / g                                             # (D_out, D_in)

    x = jax.random.normal(kx, (B, Din), dtype=jnp.float32)

    y = weight_norm_linear(x, v, g, bias, tm=8, tn=128, tk=128)
    y = jax.block_until_ready(y)

    y_ref = reference_forward(x, v, g, bias)
    assert y.shape == (B, Dout)
    assert jnp.allclose(y, y_ref, atol=1e-5, rtol=1e-5), "mismatch vs reference"

    print("KERNEL_OK")
</pallas_src>

<mosaic_0001>
module attributes {stable_mosaic.version = 11 : i64} {
  func.func @wn_matmul_kernel(%arg0: i32, %arg1: i32, %arg2: i32, %arg3: memref<8x128xf32, #tpu.memory_space<vmem>>, %arg4: memref<128x128xf32, #tpu.memory_space<vmem>>, %arg5: memref<1x128xf32, #tpu.memory_space<vmem>>, %arg6: memref<1x128xf32, #tpu.memory_space<vmem>>, %arg7: memref<8x128xf32, #tpu.memory_space<vmem>>, %arg8: memref<8x128xf32, #tpu.memory_space<vmem>>) attributes {dimension_semantics = [#tpu.dimension_semantics<parallel>, #tpu.dimension_semantics<parallel>, #tpu.dimension_semantics<arbitrary>], iteration_bounds = array<i64: 1, 1, 2>, scalar_prefetch = 0 : i64, scratch_operands = 1 : i64, tpu.core_type = #tpu.core_type<tc>, window_params = [{transform_indices = @transform_0, window_bounds = array<i64: 8, 128>}, {transform_indices = @transform_1, window_bounds = array<i64: 128, 128>}, {transform_indices = @transform_2, window_bounds = array<i64: 1, 128>}, {transform_indices = @transform_3, window_bounds = array<i64: 1, 128>}, {transform_indices = @transform_4, window_bounds = array<i64: 8, 128>}]} {
    %c0_i32 = arith.constant 0 : i32
    %0 = arith.cmpi eq, %arg2, %c0_i32 : i32
    %1 = arith.extui %0 : i1 to i32
    %c0_i32_0 = arith.constant 0 : i32
    %2 = arith.cmpi ne, %1, %c0_i32_0 : i32
    scf.if %2 {
      %cst_9 = arith.constant 0.000000e+00 : f32
      %12 = vector.broadcast %cst_9 : f32 to vector<8x128xf32>
      %c0_10 = arith.constant 0 : index
      %c0_11 = arith.constant 0 : index
      %13 = vector.load %arg8[%c0_10, %c0_11] : memref<8x128xf32, #tpu.memory_space<vmem>>, vector<8x128xf32>
      tpu.vector_store %arg8[%c0_10, %c0_11], %12 {strides = array<i32>} : memref<8x128xf32, #tpu.memory_space<vmem>>, vector<8x128xf32>,
    } else {
    }
    %c0 = arith.constant 0 : index
    %c0_1 = arith.constant 0 : index
    %3 = vector.load %arg8[%c0, %c0_1] : memref<8x128xf32, #tpu.memory_space<vmem>>, vector<8x128xf32>
    %c0_2 = arith.constant 0 : index
    %c0_3 = arith.constant 0 : index
    %4 = vector.load %arg3[%c0_2, %c0_3] : memref<8x128xf32, #tpu.memory_space<vmem>>, vector<8x128xf32>
    %c0_4 = arith.constant 0 : index
    %c0_5 = arith.constant 0 : index
    %5 = vector.load %arg4[%c0_4, %c0_5] : memref<128x128xf32, #tpu.memory_space<vmem>>, vector<128x128xf32>
    %cst = arith.constant dense<0.000000e+00> : vector<8x128xf32>
    %6 = tpu.matmul %4, %5, %cst {dimension_numbers = #tpu.dot_dimension_numbers<[1], [0], [0], [1], [0, 0, 1, 1], [], []>} : vector<8x128xf32>, vector<128x128xf32>, vector<8x128xf32> -> vector<8x128xf32>
    %7 = arith.addf %3, %6 : vector<8x128xf32>
    %c0_6 = arith.constant 0 : index
    %c0_7 = arith.constant 0 : index
    %8 = vector.load %arg8[%c0_6, %c0_7] : memref<8x128xf32, #tpu.memory_space<vmem>>, vector<8x128xf32>
    tpu.vector_store %arg8[%c0_6, %c0_7], %7 {strides = array<i32>} : memref<8x128xf32, #tpu.memory_space<vmem>>, vector<8x128xf32>,
    %c1_i32 = arith.constant 1 : i32
    %9 = arith.cmpi eq, %arg2, %c1_i32 : i32
    %10 = arith.extui %9 : i1 to i32
    %c0_i32_8 = arith.constant 0 : i32
    %11 = arith.cmpi ne, %10, %c0_i32_8 : i32
    scf.if %11 {
      %c0_9 = arith.constant 0 : index
      %c0_10 = arith.constant 0 : index
      %12 = vector.load %arg8[%c0_9, %c0_10] : memref<8x128xf32, #tpu.memory_space<vmem>>, vector<8x128xf32>
      %c0_11 = arith.constant 0 : index
      %c0_12 = arith.constant 0 : index
      %13 = vector.load %arg5[%c0_11, %c0_12] : memref<1x128xf32, #tpu.memory_space<vmem>>, vector<1x128xf32>
      %14 = vector.broadcast %13 : vector<1x128xf32> to vector<8x128xf32>
      %15 = arith.mulf %12, %14 : vector<8x128xf32>
      %c0_13 = arith.constant 0 : index
      %c0_14 = arith.constant 0 : index
      %16 = vector.load %arg6[%c0_13, %c0_14] : memref<1x128xf32, #tpu.memory_space<vmem>>, vector<1x128xf32>
      %17 = vector.broadcast %16 : vector<1x128xf32> to vector<8x128xf32>
      %18 = arith.addf %15, %17 : vector<8x128xf32>
      %c0_15 = arith.constant 0 : index
      %c0_16 = arith.constant 0 : index
      %19 = vector.load %arg7[%c0_15, %c0_16] : memref<8x128xf32, #tpu.memory_space<vmem>>, vector<8x128xf32>
      tpu.vector_store %arg7[%c0_15, %c0_16], %18 {strides = array<i32>} : memref<8x128xf32, #tpu.memory_space<vmem>>, vector<8x128xf32>,
    } else {
    }
    return
  }
  func.func @transform_0(%arg0: i32, %arg1: i32, %arg2: i32) -> (i32, i32) {
    %c0_i32 = arith.constant 0 : i32
    return %arg0, %arg2 : i32, i32
  }
  func.func @transform_1(%arg0: i32, %arg1: i32, %arg2: i32) -> (i32, i32) {
    %c0_i32 = arith.constant 0 : i32
    return %arg2, %arg1 : i32, i32
  }
  func.func @transform_2(%arg0: i32, %arg1: i32, %arg2: i32) -> (i32, i32) {
    %c0_i32 = arith.constant 0 : i32
    %c0_i32_0 = arith.constant 0 : i32
    return %c0_i32, %arg1 : i32, i32
  }
  func.func @transform_3(%arg0: i32, %arg1: i32, %arg2: i32) -> (i32, i32) {
    %c0_i32 = arith.constant 0 : i32
    %c0_i32_0 = arith.constant 0 : i32
    return %c0_i32, %arg1 : i32, i32
  }
  func.func @transform_4(%arg0: i32, %arg1: i32, %arg2: i32) -> (i32, i32) {
    %c0_i32 = arith.constant 0 : i32
    return %arg0, %arg1 : i32, i32
  }
}

</mosaic_0001>

<llo_original>
// kernel: tpu_custom_call.1
$region0: #{tpu_custom_call.1}
  #allocation0 [shape = 'u32[]', space=smem, size = 0x4, offset = 0x4, fixed_abs, tag = 'smem constant byte address 0x4 - core index']
  #allocation1 [shape = 'u32[72,128]{1,0:T(1,128)}', space=vmem, size = 0x9000, scoped, tag = 'internal scratch']
  #allocation2 [shape = 'f32[8,128]{1,0:T(8,128)}', space=vmem, size = 0x1000, scoped, tag = 'scratch operand']
  %s0 = inlined_call_operand.hbm [shape: f32[8,256], index: 0, kind: input, shape index: {}]
  %s1 = inlined_call_operand.hbm [shape: f32[256,128], index: 1, kind: input, shape index: {}]
  %s2 = inlined_call_operand.vmem [shape: f32[1,128], index: 2, kind: input, shape index: {}]
  %s3 = inlined_call_operand.vmem [shape: f32[1,128], index: 3, kind: input, shape index: {}]
  %s4 = inlined_call_operand.hbm [shape: f32[8,128], index: 4, kind: output, shape index: {}]
  %s5 = sld [smem:[#allocation0]]
  $region65: #{tpu_custom_call.1} parent=0
    _
  %s7 = ssub.s32 1, %s5
  %s8 = scalar_select 0, %s7, %s5
  $region1: #{tpu_custom_call.1} parent=0
    #allocation3 [shape = 'u8[8192]{0}', space=vmem, size = 0x2000, scoped, tag = 'input window, operand 0']
    #allocation4 [shape = 's32[2]{0}', space=sflag, size = 0x8, scoped, tag = 'scoped memory for tpu_custom_call.1']
    #allocation5 [shape = 's32[2]{0}', space=sflag, size = 0x8, scoped, tag = 'scoped memory for tpu_custom_call.1']
    #allocation6 [shape = 'u8[131072]{0}', space=vmem, size = 0x20000, scoped, tag = 'input window, operand 1']
    #allocation7 [shape = 's32[2]{0}', space=sflag, size = 0x8, scoped, tag = 'scoped memory for tpu_custom_call.1']
    #allocation8 [shape = 'u8[4096]{0}', space=vmem, size = 0x1000, scoped, tag = 'output window, operand 0, single buffered']
    %9 = vsyncpa [#allocation4], 0
    %s10 = scalar_lea.sflag [#allocation4], 1
    %11 = vsyncpa %s10, 0
    %12 = vsyncpa [#allocation7], 0
    %s13 = scalar_lea.sflag [#allocation7], 1
    %14 = vsyncpa %s13, 0
    %15 = vsyncpa [#allocation5], 0
    loop: start=0, step=1, limit=4
    $region2: #{tpu_custom_call.1} parent=1 // loop_pre_header
      _
    $region3: #{tpu_custom_call.1} parent=1 // loop_header
      %s17 = sphi 0, %s21
      %p18 = scmp.ge.s32.totalorder %s17, 4
      %s24 = sphi 0, %s43
      %s25 = sphi 0, %s39
      %s26 = sphi 0, %s35
      %s27 = sphi 0, %s24
      %s28 = sphi 0, %s25
      %s29 = sphi 0, %s26
      %s30 = sphi 0, %s27
      %s31 = sphi 0, %s28
      %s32 = sphi 0, %s29
      %s48 = sphi 0, %s50
      %s51 = sphi 0, %s48
      %s52 = sphi 0, %s51
      %s68 = sphi 0, %s52
      %s76 = sphi 0, %s78
      %s79 = sphi 0, %s76
      %s80 = sphi 0, %s79
      %s96 = sphi 0, %s80
      %s102 = sphi 0, %s104
      %s105 = sphi 0, %s102
      %s106 = sphi 0, %s105
      %s122 = sphi 0, %s106
      %s128 = sphi 0, %s130
      %s131 = sphi 0, %s128
      %s132 = sphi 0, %s131
      %s148 = sphi 0, %s132
      %s156 = sphi 0, %s158
      %s159 = sphi 0, %s156
      %s160 = sphi 0, %s159
      %s176 = sphi 0, %s160
    $region4: #{tpu_custom_call.1} parent=1 // loop_header_branch
      %20 = sbr.rel (%p18) target = $region8
    $region5: #{tpu_custom_call.1} parent=1 // loop_body
      %s22 = ssub.s32 %s17, 1
      %s23 = ssub.s32 %s17, 2
      %s33 = sadd.s32 1, %s26
      %p34 = scmp.ge.s32.totalorder %s33, 2
      %s35 = scalar_select %p34, 0, %s33
      %s36 = sadd.s32 1, %s25
      %s37 = scalar_select %p34, %s36, %s25
      %p38 = scmp.ge.s32.totalorder %s37, 1
      %s39 = scalar_select %p38, 0, %s37
      %s40 = sadd.s32 1, %s24
      %s41 = scalar_select %p38, %s40, %s24
      %p42 = scmp.ge.s32.totalorder %s41, 1
      %s43 = scalar_select %p42, 0, %s41
      %s44 = ssub.s32 %s24, %s43
      %s45 = ssub.s32 %s26, %s35
      %s46 = sor.u32 %s44, %s45
      %p47 = scmp.eq.s32.totalorder %s46, 0
      %s49 = sadd.s32 %s48, 1
      %s50 = scalar_select %p47, %s48, %s49
      %p53 = pneg %p47
      %p54 = scmp.eq.s32.totalorder %s17, 1
      %p55 = por %p53, %p54
      %p56 = scmp.ne.s32.totalorder %s48, %s51
      %p57 = scmp.eq.s32.totalorder %s17, 0
      %p58 = por %p56, %p57
      %p59 = scmp.ne.s32.totalorder %s48, %s51
      %p60 = scmp.eq.s32.totalorder %s22, 1
      %p61 = por %p59, %p60
      %p62 = scmp.ne.s32.totalorder %s51, %s52
      %p63 = scmp.eq.s32.totalorder %s22, 0
      %p64 = por %p62, %p63
      %p65 = scmp.ne.s32.totalorder %s51, %s52
      %p66 = scmp.eq.s32.totalorder %s23, 1
      %p67 = por %p65, %p66
      %p69 = scmp.ne.s32.totalorder %s52, %s68
      %p70 = scmp.eq.s32.totalorder %s23, 0
      %p71 = por %p69, %p70
      %s72 = ssub.s32 %s26, %s35
      %s73 = ssub.s32 %s25, %s39
      %s74 = sor.u32 %s72, %s73
      %p75 = scmp.eq.s32.totalorder %s74, 0
      %s77 = sadd.s32 %s76, 1
      %s78 = scalar_select %p75, %s76, %s77
      %p81 = pneg %p75
      %p82 = scmp.eq.s32.totalorder %s17, 1
      %p83 = por %p81, %p82
      %p84 = scmp.ne.s32.totalorder %s76, %s79
      %p85 = scmp.eq.s32.totalorder %s17, 0
      %p86 = por %p84, %p85
      %p87 = scmp.ne.s32.totalorder %s76, %s79
      %p88 = scmp.eq.s32.totalorder %s22, 1
      %p89 = por %p87, %p88
      %p90 = scmp.ne.s32.totalorder %s79, %s80
      %p91 = scmp.eq.s32.totalorder %s22, 0
      %p92 = por %p90, %p91
      %p93 = scmp.ne.s32.totalorder %s79, %s80
      %p94 = scmp.eq.s32.totalorder %s23, 1
      %p95 = por %p93, %p94
      %p97 = scmp.ne.s32.totalorder %s80, %s96
      %p98 = scmp.eq.s32.totalorder %s23, 0
      %p99 = por %p97, %p98
      %s100 = ssub.s32 %s25, %s39
      %p101 = scmp.eq.s32.totalorder %s100, 0
      %s103 = sadd.s32 %s102, 1
      %s104 = scalar_select %p101, %s102, %s103
      %p107 = pneg %p101
      %p108 = scmp.eq.s32.totalorder %s17, 1
      %p109 = por %p107, %p108
      %p110 = scmp.ne.s32.totalorder %s102, %s105
      %p111 = scmp.eq.s32.totalorder %s17, 0
      %p112 = por %p110, %p111
      %p113 = scmp.ne.s32.totalorder %s102, %s105
      %p114 = scmp.eq.s32.totalorder %s22, 1
      %p115 = por %p113, %p114
      %p116 = scmp.ne.s32.totalorder %s105, %s106
      %p117 = scmp.eq.s32.totalorder %s22, 0
      %p118 = por %p116, %p117
      %p119 = scmp.ne.s32.totalorder %s105, %s106
      %p120 = scmp.eq.s32.totalorder %s23, 1
      %p121 = por %p119, %p120
      %p123 = scmp.ne.s32.totalorder %s106, %s122
      %p124 = scmp.eq.s32.totalorder %s23, 0
      %p125 = por %p123, %p124
      %s126 = ssub.s32 %s25, %s39
      %p127 = scmp.eq.s32.totalorder %s126, 0
      %s129 = sadd.s32 %s128, 1
      %s130 = scalar_select %p127, %s128, %s129
      %p133 = pneg %p127
      %p134 = scmp.eq.s32.totalorder %s17, 1
      %p135 = por %p133, %p134
      %p136 = scmp.ne.s32.totalorder %s128, %s131
      %p137 = scmp.eq.s32.totalorder %s17, 0
      %p138 = por %p136, %p137
      %p139 = scmp.ne.s32.totalorder %s128, %s131
      %p140 = scmp.eq.s32.totalorder %s22, 1
      %p141 = por %p139, %p140
      %p142 = scmp.ne.s32.totalorder %s131, %s132
      %p143 = scmp.eq.s32.totalorder %s22, 0
      %p144 = por %p142, %p143
      %p145 = scmp.ne.s32.totalorder %s131, %s132
      %p146 = scmp.eq.s32.totalorder %s23, 1
      %p147 = por %p145, %p146
      %p149 = scmp.ne.s32.totalorder %s132, %s148
      %p150 = scmp.eq.s32.totalorder %s23, 0
      %p151 = por %p149, %p150
      %s152 = ssub.s32 %s24, %s43
      %s153 = ssub.s32 %s25, %s39
      %s154 = sor.u32 %s152, %s153
      %p155 = scmp.eq.s32.totalorder %s154, 0
      %s157 = sadd.s32 %s156, 1
      %s158 = scalar_select %p155, %s156, %s157
      %p161 = pneg %p155
      %p162 = scmp.eq.s32.totalorder %s17, 1
      %p163 = por %p161, %p162
      %p164 = scmp.ne.s32.totalorder %s156, %s159
      %p165 = scmp.eq.s32.totalorder %s17, 0
      %p166 = por %p164, %p165
      %p167 = scmp.ne.s32.totalorder %s156, %s159
      %p168 = scmp.eq.s32.totalorder %s22, 1
      %p169 = por %p167, %p168
      %p170 = scmp.ne.s32.totalorder %s159, %s160
      %p171 = scmp.eq.s32.totalorder %s22, 0
      %p172 = por %p170, %p171
      %p173 = scmp.ne.s32.totalorder %s159, %s160
      %p174 = scmp.eq.s32.totalorder %s23, 1
      %p175 = por %p173, %p174
      %p177 = scmp.ne.s32.totalorder %s160, %s176
      %p178 = scmp.eq.s32.totalorder %s23, 0
      %p179 = por %p177, %p178
      %p180 = scmp.le.s32.totalorder 1, %s17
      %p181 = scmp.lt.s32.totalorder %s17, 3
      %p182 = pnand %p180, %p181
      %p183 = pneg %p182
      // Predicated region
      $region9: #{tpu_custom_call.1} parent=5 // pred_check
        _
      $region10: #{tpu_custom_call.1} parent=5 // pred_check_branch
        %185 = sbr.rel (%p182) target = $region12
      $region11: #{tpu_custom_call.1} parent=5 // pred_region
        %s186 = ssub.s32 %s17, 1
        // Predicated region
        $region13: #{tpu_custom_call.1} parent=11 // pred_check
          %p187 = pneg %p118
        $region14: #{tpu_custom_call.1} parent=11 // pred_check_branch
          %189 = sbr.rel (%p187) target = $region16
        $region15: #{tpu_custom_call.1} parent=11 // pred_region
          %p190 = scmp.lt.s32.totalorder %s28, 0
          %s191 = scalar_select %p190, %s28, 0
          %s192 = scalar_lea.vmem %s2, %s191
        $region16: #{tpu_custom_call.1} parent=11 // pred_fallthru
          _
        // Predicated region
        $region17: #{tpu_custom_call.1} parent=11 // pred_check
          %p193 = pneg %p144
        $region18: #{tpu_custom_call.1} parent=11 // pred_check_branch
          %195 = sbr.rel (%p193) target = $region20
        $region19: #{tpu_custom_call.1} parent=11 // pred_region
          %p196 = scmp.lt.s32.totalorder %s28, 0
          %s197 = scalar_select %p196, %s28, 0
          %s198 = scalar_lea.vmem %s3, %s197
        $region20: #{tpu_custom_call.1} parent=11 // pred_fallthru
          _
      $region12: #{tpu_custom_call.1} parent=5 // pred_fallthru
        _
      %p199 = scmp.lt.s32.totalorder %s17, 2
      // Predicated region
      $region21: #{tpu_custom_call.1} parent=5 // pred_check
        %p200 = pneg %p199
      $region22: #{tpu_custom_call.1} parent=5 // pred_check_branch
        %202 = sbr.rel (%p200) target = $region24
      $region23: #{tpu_custom_call.1} parent=5 // pred_region
        // Predicated region
        $region25: #{tpu_custom_call.1} parent=23 // pred_check
          %p203 = pneg %p58
        $region26: #{tpu_custom_call.1} parent=23 // pred_check_branch
          %205 = sbr.rel (%p203) target = $region28
        $region27: #{tpu_custom_call.1} parent=23 // pred_region
          %s206 = sand.u32 %s48, 1
          %s207 = scalar_lea.sflag [#allocation4], %s206
          %s208 = sand.u32 %s48, 1
          %s209 = smul.addr %s208, 8
          %s210 = scalar_lea.vmem [#allocation3], %s209
          %212 = vsyncadd %s207, 0
          %s213 = smul.addr %s24, 2
          %s214 = sadd.s32 %s26, %s213
          %s215 = smul.addr %s214, 8
          %s216 = scalar_lea.hbm %s0, %s215
          %s218 = sshll.u32 %s216, 4
          %s219 = int_to_ptr.hbm [resolvable:$true] %s218
          %s220 = sshll.u32 %s210, 4
          %s221 = int_to_ptr.vmem [resolvable:$true] %s220
          %223 = dma.hbm_to_vmem [thread:$0]  %s219, 128, %s221, %s207
        $region28: #{tpu_custom_call.1} parent=23 // pred_fallthru
          _
        // Predicated region
        $region29: #{tpu_custom_call.1} parent=23 // pred_check
          %p224 = pneg %p86
        $region30: #{tpu_custom_call.1} parent=23 // pred_check_branch
          %226 = sbr.rel (%p224) target = $region32
        $region31: #{tpu_custom_call.1} parent=23 // pred_region
          %s227 = sand.u32 %s76, 1
          %s228 = scalar_lea.sflag [#allocation7], %s227
          %s229 = sand.u32 %s76, 1
          %s230 = smul.addr %s229, 128
          %s231 = scalar_lea.vmem [#allocation6], %s230
          %s232 = smul.u32 16, %s26
          %234 = vsyncadd %s228, 0
          %s235 = sadd.s32 %s25, %s232
          %s236 = smul.addr %s235, 8
          %s237 = scalar_lea.hbm %s1, %s236
          %s238 = sshll.u32 %s237, 4
          %s239 = int_to_ptr.hbm [resolvable:$true] %s238
          %s240 = sshll.u32 %s231, 4
          %s241 = int_to_ptr.vmem [resolvable:$true] %s240
          %246 = dma.hbm_to_vmem [thread:$0]  %s239, 2048, %s241, %s228, 128, 128, 8
        $region32: #{tpu_custom_call.1} parent=23 // pred_fallthru
          _
      $region24: #{tpu_custom_call.1} parent=5 // pred_fallthru
        _
      %p247 = scmp.le.s32.totalorder 1, %s17
      %p248 = scmp.lt.s32.totalorder %s17, 3
      %p249 = pnand %p247, %p248
      %p250 = pneg %p249
      // Predicated region
      $region33: #{tpu_custom_call.1} parent=5 // pred_check
        _
      $region34: #{tpu_custom_call.1} parent=5 // pred_check_branch
        %252 = sbr.rel (%p249) target = $region36
      $region35: #{tpu_custom_call.1} parent=5 // pred_region
        %s253 = ssub.s32 %s17, 1
        %s254 = sand.u32 %s51, 1
        %s255 = scalar_lea.sflag [#allocation4], %s254
        %s256 = sand.u32 %s51, 1
        %s257 = smul.addr %s256, 8
        %s258 = scalar_lea.vmem [#allocation3], %s257
        // Predicated region
        $region37: #{tpu_custom_call.1} parent=35 // pred_check
          %p259 = pneg %p64
        $region38: #{tpu_custom_call.1} parent=35 // pred_check_branch
          %261 = sbr.rel (%p259) target = $region40
        $region39: #{tpu_custom_call.1} parent=35 // pred_region
          %263 = dma.done %s255, 128
        $region40: #{tpu_custom_call.1} parent=35 // pred_fallthru
          _
        %s264 = sand.u32 %s79, 1
        %s265 = scalar_lea.sflag [#allocation7], %s264
        %s266 = sand.u32 %s79, 1
        %s267 = smul.addr %s266, 128
        %s268 = scalar_lea.vmem [#allocation6], %s267
        // Predicated region
        $region41: #{tpu_custom_call.1} parent=35 // pred_check
          %p269 = pneg %p92
        $region42: #{tpu_custom_call.1} parent=35 // pred_check_branch
          %271 = sbr.rel (%p269) target = $region44
        $region43: #{tpu_custom_call.1} parent=35 // pred_region
          %273 = dma.done %s265, 2048
        $region44: #{tpu_custom_call.1} parent=35 // pred_fallthru
          _
        %s274 = sand.u32 %s51, 1
        %s275 = scalar_lea.sflag [#allocation4], %s274
        %s276 = sand.u32 %s51, 1
        %s277 = smul.addr %s276, 8
        %s278 = scalar_lea.vmem [#allocation3], %s277
        %p279 = pneg %p64
        %p280 = pneg %p61
        %s281 = sand.u32 %s79, 1
        %s282 = scalar_lea.sflag [#allocation7], %s281
        %s283 = sand.u32 %s79, 1
        %s284 = smul.addr %s283, 128
        %s285 = scalar_lea.vmem [#allocation6], %s284
        %p286 = pneg %p92
        %p287 = pneg %p89
        %p288 = scmp.lt.s32.totalorder %s28, 0
        %s289 = scalar_select %p288, %s28, 0
        %s290 = scalar_lea.vmem %s2, %s289
        %p291 = pneg %p118
        %p292 = pneg %p115
        %p293 = scmp.lt.s32.totalorder %s28, 0
        %s294 = scalar_select %p293, %s28, 0
        %s295 = scalar_lea.vmem %s3, %s294
        %p296 = pneg %p144
        %p297 = pneg %p141
        %p298 = pneg %p172
        %p299 = pneg %p169
        %s300 = smul.u32 16, %s29
        %p301 = scmp.lt.s32.totalorder %s28, 0
        %s302 = scalar_select %p301, %s28, 0
        %s303 = scalar_lea.vmem %s2, %s302
        %p304 = scmp.lt.s32.totalorder %s28, 0
        %s305 = scalar_select %p304, %s28, 0
        %s306 = scalar_lea.vmem %s3, %s305
        %p307 = scmp.eq.s32.totalorder %s29, 0
        // Predicated region
        $region45: #{tpu_custom_call.1} parent=35 // pred_check
          %p308 = pneg %p307
        $region46: #{tpu_custom_call.1} parent=35 // pred_check_branch
          %310 = sbr.rel (%p308) target = $region48
        $region47: #{tpu_custom_call.1} parent=35 // pred_region
          %311 = vst [vmem:[#allocation2] sm:$0xff] 0.0
        $region48: #{tpu_custom_call.1} parent=35 // pred_fallthru
          _
        %v312 = vld [vmem:[#allocation2] sm:$0xff]
        %v313 = vld [vmem:[%s258] sm:$0xff]
        %v314 = vld [vmem:[%s268] sm:$0xff]
        %v315 = vld [vmem:[%s268 + $0x8] sm:$0xff]
        %v316 = vld [vmem:[%s268 + $0x10] sm:$0xff]
        %v317 = vld [vmem:[%s268 + $0x18] sm:$0xff]
        %v318 = vld [vmem:[%s268 + $0x20] sm:$0xff]
        %v319 = vld [vmem:[%s268 + $0x28] sm:$0xff]
        %v320 = vld [vmem:[%s268 + $0x30] sm:$0xff]
        %v321 = vld [vmem:[%s268 + $0x38] sm:$0xff]
        %v322 = vld [vmem:[%s268 + $0x40] sm:$0xff]
        %v323 = vld [vmem:[%s268 + $0x48] sm:$0xff]
        %v324 = vld [vmem:[%s268 + $0x50] sm:$0xff]
        %v325 = vld [vmem:[%s268 + $0x58] sm:$0xff]
        %v326 = vld [vmem:[%s268 + $0x60] sm:$0xff]
        %v327 = vld [vmem:[%s268 + $0x68] sm:$0xff]
        %v328 = vld [vmem:[%s268 + $0x70] sm:$0xff]
        %v329 = vld [vmem:[%s268 + $0x78] sm:$0xff]
        %330 = vmatpush.msra.mxu0 %v329
        %331 = vmatpush.msra.mxu0 %v328
        %332 = vmatpush.msra.mxu0 %v327
        %333 = vmatpush.msra.mxu0 %v326
        %334 = vmatpush.msra.mxu0 %v325
        %335 = vmatpush.msra.mxu0 %v324
        %336 = vmatpush.msra.mxu0 %v323
        %337 = vmatpush.msra.mxu0 %v322
        %338 = vmatpush.msra.mxu0 %v321
        %339 = vmatpush.msra.mxu0 %v320
        %340 = vmatpush.msra.mxu0 %v319
        %341 = vmatpush.msra.mxu0 %v318
        %342 = vmatpush.msra.mxu0 %v317
        %343 = vmatpush.msra.mxu0 %v316
        %344 = vmatpush.msra.mxu0 %v315
        %345 = vmatpush.msra.mxu0 %v314
        %346 = vmatmul.f32.gmra.mxu0 %v313
        %v347 = vpop.f32.mrf.mxu0
        %v348 = vadd.f32 0.0, %v347
        %349 = vdwg.mxu0
        %v350 = vadd.f32 %v312, %v348
        %351 = vst [vmem:[#allocation2] sm:$0xff] %v350
        %p352 = scmp.eq.s32.totalorder %s29, 1
        // Predicated region
        $region49: #{tpu_custom_call.1} parent=35 // pred_check
          %p353 = pneg %p352
        $region50: #{tpu_custom_call.1} parent=35 // pred_check_branch
          %355 = sbr.rel (%p353) target = $region52
        $region51: #{tpu_custom_call.1} parent=35 // pred_region
          %v356 = vld [vmem:[#allocation2] sm:$0xff]
          %v357 = vld [vmem:[%s303] sm:$0x1]
          %v359 = vperm.slane %v357, 0
          %v361 = vmul.f32 %v356, %v359
          %v362 = vld [vmem:[%s306] sm:$0x1]
          %v364 = vperm.slane %v362, 0
          %v366 = vadd.f32 %v361, %v364
          %367 = vst [vmem:[#allocation8] sm:$0xff] %v366
        $region52: #{tpu_custom_call.1} parent=35 // pred_fallthru
          _
        // Predicated region
        $region53: #{tpu_custom_call.1} parent=35 // pred_check
          %p368 = pneg %p169
        $region54: #{tpu_custom_call.1} parent=35 // pred_check_branch
          %370 = sbr.rel (%p368) target = $region56
        $region55: #{tpu_custom_call.1} parent=35 // pred_region
          %372 = vsyncadd [#allocation5], 0
          %s373 = sadd.s32 %s28, %s27
          %s374 = smul.addr %s373, 8
          %s375 = scalar_lea.hbm %s4, %s374
          %s377 = sshll.u32 [#allocation8], 4
          %s378 = int_to_ptr.vmem [resolvable:$true] %s377
          %s379 = sshll.u32 %s375, 4
          %s380 = int_to_ptr.hbm [resolvable:$true] %s379
          %382 = dma.vmem_to_hbm [thread:$0]  %s378, 128, %s380, [#allocation5]
        $region56: #{tpu_custom_call.1} parent=35 // pred_fallthru
          _
        // Predicated region
        $region57: #{tpu_custom_call.1} parent=35 // pred_check
          %p383 = pneg %p169
        $region58: #{tpu_custom_call.1} parent=35 // pred_check_branch
          %385 = sbr.rel (%p383) target = $region60
        $region59: #{tpu_custom_call.1} parent=35 // pred_region
          %387 = dma.done [#allocation5], 128
        $region60: #{tpu_custom_call.1} parent=35 // pred_fallthru
          _
      $region36: #{tpu_custom_call.1} parent=5 // pred_fallthru
        _
      %p388 = scmp.le.s32.totalorder 2, %s17
      // Predicated region
      $region61: #{tpu_custom_call.1} parent=5 // pred_check
        %p389 = pneg %p388
      $region62: #{tpu_custom_call.1} parent=5 // pred_check_branch
        %391 = sbr.rel (%p389) target = $region64
      $region63: #{tpu_custom_call.1} parent=5 // pred_region
        %s392 = ssub.s32 %s17, 2
      $region64: #{tpu_custom_call.1} parent=5 // pred_fallthru
        _
    $region6: #{tpu_custom_call.1} parent=1 // loop_footer
      %s21 = sadd.s32 1, %s17
    $region7: #{tpu_custom_call.1} parent=1 // loop_footer_branch
      %16 = sbr.rel target = $region3
    $region8: #{tpu_custom_call.1} parent=1 // loop_exit
      _
    %393 = vsyncpa [#allocation4], 1
    %s394 = scalar_lea.sflag [#allocation4], 1
    %395 = vsyncpa %s394, 1
    %396 = vsyncpa [#allocation7], 1
    %s397 = scalar_lea.sflag [#allocation7], 1
    %398 = vsyncpa %s397, 1
    %399 = vsyncpa [#allocation5], 1
    %s400 = scalar_lea.sflag [#allocation5], 1
    %401 = vsyncpa %s400, 1

</llo_original>
